<compile_context>
chip_gen: v5e
topology: v5e:2x2
jax: 0.10.0
libtpu: 0.0.40
codegen_flags: <defaults>
</compile_context>

<pallas_src>
import jax
import jax.numpy as jnp
from jax.experimental import pallas as pl
from jax.experimental.pallas import tpu as pltpu


def _round_up(x, m):
    return ((x + m - 1) // m) * m


def _largest_aligned_divisor(total, cap, align):
    """Largest multiple of `align` that divides `total` and is <= cap.

    Assumes `total` is a positive multiple of `align`; falls back to `align`.
    """
    t = min(cap, total)
    t -= t % align
    while t >= align:
        if total % t == 0:
            return t
        t -= align
    return align


def _make_linear_kernel(*, nk, tk, x_resident, acc_in_out):
    """Build the kernel body for the chosen configuration.

    nk:         number of K (reduction) grid steps.
    tk:         K tile width.
    x_resident: x block holds the full padded D; slice the K chunk in-kernel.
    acc_in_out: accumulate directly into the f32 output block (no scratch).
    """

    def kernel(x_ref, w_ref, b_ref, o_ref, *scratch):
        k = pl.program_id(2)

        if x_resident and nk > 1:
            start = pl.multiple_of(k * tk, 128)
            x = x_ref[:, pl.ds(start, tk)]
        else:
            x = x_ref[...]

        part = jnp.dot(x, w_ref[...], preferred_element_type=jnp.float32)

        if nk == 1:
            # Single reduction step: no accumulator revisit at all.
            res = part + b_ref[...].astype(jnp.float32)
            o_ref[...] = res.astype(o_ref.dtype)
            return

        acc = o_ref if acc_in_out else scratch[0]

        @pl.when(k == 0)
        def _():
            # Fold the bias into the accumulator init.
            acc[...] = jnp.broadcast_to(b_ref[...].astype(jnp.float32), acc.shape)

        acc[...] += part

        if not acc_in_out:
            @pl.when(k == nk - 1)
            def _():
                o_ref[...] = acc[...].astype(o_ref.dtype)

    return kernel


def classifier_head(x, weight, bias, *,
                    weight_is_transposed=False,
                    out_dtype=jnp.float32,
                    tm_max=256,
                    weight_buffers=2):
    """nn.Linear forward: y = x @ W.T + b.

    x:      (B, D)
    weight: (C, D) PyTorch layout, or (D, C) if weight_is_transposed=True.
            Store the parameter pre-transposed (and in bf16) upstream to avoid
            any per-call transpose / cast traffic.
    bias:   (C,)
    """
    B, D = x.shape
    if weight_is_transposed:
        w_t = weight                              # (D, C) — zero-copy path
    else:
        # TODO(synk): store the classifier weight transposed (D, C) upstream;
        # this per-call transpose is an extra HBM pass over the weight.
        w_t = weight.T                            # (D, C)
    C = w_t.shape[1]
    assert w_t.shape[0] == D and bias.shape == (C,)

    x_isz = jnp.dtype(x.dtype).itemsize
    w_isz = jnp.dtype(w_t.dtype).itemsize
    b_isz = jnp.dtype(bias.dtype).itemsize
    o_isz = jnp.dtype(out_dtype).itemsize
    acc_in_out = jnp.dtype(out_dtype) == jnp.float32

    # ---- per-generation VMEM / tile caps ------------------------------------
    try:
        vmem_cap = int(pltpu.get_tpu_info().vmem_capacity_bytes)
    except Exception:
        vmem_cap = 64 * 1024 * 1024               # conservative (v7x per core)
    big_vmem = vmem_cap >= 100 * 1024 * 1024      # v5e / v6e: 128 MiB
    if big_vmem:
        tk_max = 8192 if w_isz <= 2 else 4096     # allows tk == Dp (single K pass)
        tn_max = 2048
    else:                                         # v7x: 64 MiB per core
        tk_max = 2048 if w_isz <= 2 else 1024
        tn_max = 2048

    # ---- tile selection (minimal padding: C, D only to 128 multiples) -------
    tm = min(tm_max, _round_up(B, 8))
    tm = max(8, (tm // 8) * 8)
    Bp = _round_up(B, tm)                 # batch pad is cheap (x is the small operand)
    Cp = _round_up(C, 128)
    Dp = _round_up(D, 128)
    tn = _largest_aligned_divisor(Cp, tn_max, 128)
    tk = _largest_aligned_divisor(Dp, tk_max, 128)

    # >=2 tiles on the parallel axes so both v7x TensorCores get work.
    if (Bp // tm) * (Cp // tn) < 2:
        if Cp // 128 >= 2:
            tn = _largest_aligned_divisor(Cp, Cp // 2, 128)
        elif Bp // 8 >= 2 and tm > 8:
            tm = _largest_aligned_divisor(Bp, tm // 2, 8)

    # ---- fit the (double-buffered) working set in VMEM ----------------------
    budget = int(0.75 * vmem_cap)

    def working_set(tm_, tn_, tk_, x_res_):
        xk = Dp if x_res_ else tk_
        ws = 2 * tm_ * xk * x_isz                  # x (double-buffered)
        ws += weight_buffers * tk_ * tn_ * w_isz   # weight stream
        ws += 2 * tn_ * b_isz                      # bias row
        ws += 2 * tm_ * tn_ * o_isz                # output block
        if not acc_in_out:
            ws += tm_ * tn_ * 4                    # f32 scratch accumulator
        return ws

    x_resident = working_set(tm, tn, tk, True) <= budget
    while working_set(tm, tn, tk, x_resident) > budget:
        if x_resident:
            x_resident = False
        elif tk > 128:
            tk = _largest_aligned_divisor(Dp, tk // 2, 128)
        elif tn > 128:
            tn = _largest_aligned_divisor(Cp, tn // 2, 128)
        elif tm > 8:
            tm = max(8, (tm // 2 // 8) * 8)
            Bp = _round_up(B, tm)
        else:
            break

    nm, nn, nk = Bp // tm, Cp // tn, Dp // tk

    # ---- pad operands (zeros on D are reduction-neutral; B/C pad sliced off)
    xp = x if (Bp == B and Dp == D) else jnp.pad(x, ((0, Bp - B), (0, Dp - D)))
    wp = w_t if (Dp == D and Cp == C) else jnp.pad(w_t, ((0, Dp - D), (0, Cp - C)))
    bp = (bias if Cp == C else jnp.pad(bias, (0, Cp - C))).reshape(1, Cp)

    # ---- specs ---------------------------------------------------------------
    if x_resident:
        x_spec = pl.BlockSpec((tm, Dp), lambda i, j, k: (i, 0))   # fetched once per i
    else:
        x_spec = pl.BlockSpec((tm, tk), lambda i, j, k: (i, k))
    if weight_buffers == 2:
        w_spec = pl.BlockSpec((tk, tn), lambda i, j, k: (k, j))
    else:
        # Optional deeper buffering if xprof shows exposed weight DMA.
        w_spec = pl.BlockSpec((tk, tn), lambda i, j, k: (k, j),
                              pipeline_mode=pl.Buffered(weight_buffers))
    b_spec = pl.BlockSpec((1, tn), lambda i, j, k: (0, j))
    o_spec = pl.BlockSpec((tm, tn), lambda i, j, k: (i, j))

    scratch_shapes = []
    if nk > 1 and not acc_in_out:
        scratch_shapes.append(pltpu.VMEM((tm, tn), jnp.float32))

    ws = working_set(tm, tn, tk, x_resident)
    vmem_limit = int(min(0.9 * vmem_cap, max(2 * ws, 32 * 1024 * 1024)))

    kernel = _make_linear_kernel(nk=nk, tk=tk, x_resident=x_resident,
                                 acc_in_out=acc_in_out)

    out = pl.pallas_call(
        kernel,
        out_shape=jax.ShapeDtypeStruct((Bp, Cp), out_dtype),
        grid=(nm, nn, nk),
        in_specs=[x_spec, w_spec, b_spec],
        out_specs=o_spec,
        scratch_shapes=scratch_shapes,
        compiler_params=pltpu.CompilerParams(
            dimension_semantics=("parallel", "parallel", "arbitrary"),
            vmem_limit_bytes=vmem_limit),
    )(xp, wp, bp)

    return out[:B, :C]


if __name__ == "__main__":
    # Small shapes consistent with the module: a pooled-feature classifier head.
    batch, input_dim, num_classes = 2, 32, 8

    key = jax.random.PRNGKey(0)
    kx, kw, kb = jax.random.split(key, 3)

    x = jax.random.normal(kx, (batch, input_dim), dtype=jnp.float32)
    # Deterministic init mimicking nn.Linear's uniform(-1/sqrt(D), 1/sqrt(D)).
    bound = 1.0 / jnp.sqrt(jnp.float32(input_dim))
    weight = jax.random.uniform(kw, (num_classes, input_dim),
                                minval=-bound, maxval=bound, dtype=jnp.float32)
    bias = jax.random.uniform(kb, (num_classes,),
                              minval=-bound, maxval=bound, dtype=jnp.float32)

    # --- exact nn.Linear (f32) semantics, PyTorch (C, D) weight layout -------
    y_f32 = jax.block_until_ready(classifier_head(x, weight, bias))
    ref_f32 = x @ weight.T + bias
    assert y_f32.shape == (batch, num_classes)
    assert jnp.allclose(y_f32, ref_f32, atol=1e-5, rtol=1e-5)

    # --- optimized path: bf16-stored, pre-transposed (D, C) params, f32 acc --
    x_bf = x.astype(jnp.bfloat16)
    w_t_bf = weight.T.astype(jnp.bfloat16)        # parameter stored (D, C) bf16
    y_bf = jax.block_until_ready(
        classifier_head(x_bf, w_t_bf, bias, weight_is_transposed=True))
    ref_bf = x_bf.astype(jnp.float32) @ w_t_bf.astype(jnp.float32) + bias
    assert y_bf.shape == (batch, num_classes)
    assert jnp.allclose(y_bf, ref_bf, atol=1e-4, rtol=1e-4)

    print("KERNEL_OK")
</pallas_src>

<mosaic_0001>
module attributes {stable_mosaic.version = 11 : i64} {
  func.func @kernel(%arg0: i32, %arg1: i32, %arg2: i32, %arg3: memref<8x128xf32, #tpu.memory_space<vmem>>, %arg4: memref<128x128xf32, #tpu.memory_space<vmem>>, %arg5: memref<1x128xf32, #tpu.memory_space<vmem>>, %arg6: memref<8x128xf32, #tpu.memory_space<vmem>>) attributes {dimension_semantics = [#tpu.dimension_semantics<parallel>, #tpu.dimension_semantics<parallel>, #tpu.dimension_semantics<arbitrary>], iteration_bounds = array<i64: 1, 1, 1>, scalar_prefetch = 0 : i64, scratch_operands = 0 : i64, tpu.core_type = #tpu.core_type<tc>, window_params = [{transform_indices = @transform_0, window_bounds = array<i64: 8, 128>}, {transform_indices = @transform_1, window_bounds = array<i64: 128, 128>}, {transform_indices = @transform_2, window_bounds = array<i64: 1, 128>}, {transform_indices = @transform_3, window_bounds = array<i64: 8, 128>}]} {
    %c0 = arith.constant 0 : index
    %c0_0 = arith.constant 0 : index
    %0 = vector.load %arg3[%c0, %c0_0] : memref<8x128xf32, #tpu.memory_space<vmem>>, vector<8x128xf32>
    %c0_1 = arith.constant 0 : index
    %c0_2 = arith.constant 0 : index
    %1 = vector.load %arg4[%c0_1, %c0_2] : memref<128x128xf32, #tpu.memory_space<vmem>>, vector<128x128xf32>
    %cst = arith.constant dense<0.000000e+00> : vector<8x128xf32>
    %2 = tpu.matmul %0, %1, %cst {dimension_numbers = #tpu.dot_dimension_numbers<[1], [0], [0], [1], [0, 0, 1, 1], [], []>} : vector<8x128xf32>, vector<128x128xf32>, vector<8x128xf32> -> vector<8x128xf32>
    %c0_3 = arith.constant 0 : index
    %c0_4 = arith.constant 0 : index
    %3 = vector.load %arg5[%c0_3, %c0_4] : memref<1x128xf32, #tpu.memory_space<vmem>>, vector<1x128xf32>
    %4 = vector.broadcast %3 : vector<1x128xf32> to vector<8x128xf32>
    %5 = arith.addf %2, %4 : vector<8x128xf32>
    %c0_5 = arith.constant 0 : index
    %c0_6 = arith.constant 0 : index
    %6 = vector.load %arg6[%c0_5, %c0_6] : memref<8x128xf32, #tpu.memory_space<vmem>>, vector<8x128xf32>
    tpu.vector_store %arg6[%c0_5, %c0_6], %5 {strides = array<i32>} : memref<8x128xf32, #tpu.memory_space<vmem>>, vector<8x128xf32>,
    return
  }
  func.func @transform_0(%arg0: i32, %arg1: i32, %arg2: i32) -> (i32, i32) {
    %c0_i32 = arith.constant 0 : i32
    %c0_i32_0 = arith.constant 0 : i32
    return %arg0, %c0_i32 : i32, i32
  }
  func.func @transform_1(%arg0: i32, %arg1: i32, %arg2: i32) -> (i32, i32) {
    %c0_i32 = arith.constant 0 : i32
    return %arg2, %arg1 : i32, i32
  }
  func.func @transform_2(%arg0: i32, %arg1: i32, %arg2: i32) -> (i32, i32) {
    %c0_i32 = arith.constant 0 : i32
    %c0_i32_0 = arith.constant 0 : i32
    return %c0_i32, %arg1 : i32, i32
  }
  func.func @transform_3(%arg0: i32, %arg1: i32, %arg2: i32) -> (i32, i32) {
    %c0_i32 = arith.constant 0 : i32
    return %arg0, %arg1 : i32, i32
  }
}

</mosaic_0001>

<llo_original>
// kernel: tpu_custom_call.1
$region0: #{tpu_custom_call.1}
  #allocation0 [shape = 'u32[]', space=smem, size = 0x4, offset = 0x4, fixed_abs, tag = 'smem constant byte address 0x4 - core index']
  #allocation1 [shape = 'u32[72,128]{1,0:T(1,128)}', space=vmem, size = 0x9000, scoped, tag = 'internal scratch']
  %s0 = inlined_call_operand.hbm [shape: f32[8,128], index: 0, kind: input, shape index: {}]
  %s1 = inlined_call_operand.hbm [shape: f32[128,128], index: 1, kind: input, shape index: {}]
  %s2 = inlined_call_operand.vmem [shape: f32[1,128], index: 2, kind: input, shape index: {}]
  %s3 = inlined_call_operand.hbm [shape: f32[8,128], index: 3, kind: output, shape index: {}]
  %s4 = sld [smem:[#allocation0]]
  $region30: #{tpu_custom_call.1} parent=0
    _
  %s6 = ssub.s32 1, %s4
  %s7 = scalar_select 0, %s6, %s4
  $region1: #{tpu_custom_call.1} parent=0
    #allocation2 [shape = 'u8[4096]{0}', space=vmem, size = 0x1000, scoped, tag = 'input window, operand 0, single buffered']
    #allocation3 [shape = 's32[1]{0}', space=sflag, size = 0x4, scoped, tag = 'scoped memory for tpu_custom_call.1']
    #allocation4 [shape = 's32[1]{0}', space=sflag, size = 0x4, scoped, tag = 'scoped memory for tpu_custom_call.1']
    #allocation5 [shape = 'u8[65536]{0}', space=vmem, size = 0x10000, scoped, tag = 'input window, operand 1, single buffered']
    #allocation6 [shape = 's32[1]{0}', space=sflag, size = 0x4, scoped, tag = 'scoped memory for tpu_custom_call.1']
    #allocation7 [shape = 'u8[4096]{0}', space=vmem, size = 0x1000, scoped, tag = 'output window, operand 0, single buffered']
    %8 = vsyncpa [#allocation3], 0
    %9 = vsyncpa [#allocation6], 0
    %10 = vsyncpa [#allocation4], 0
    // Predicated region
    $region2: #{tpu_custom_call.1} parent=1 // pred_check
      _
    $region3: #{tpu_custom_call.1} parent=1 // pred_check_branch
      %12 = sbr.rel (0) target = $region5
    $region4: #{tpu_custom_call.1} parent=1 // pred_region
      %14 = vsyncadd [#allocation3], 0
      %s16 = sshll.u32 %s0, 4
      %s17 = int_to_ptr.hbm [resolvable:$true] %s16
      %s18 = sshll.u32 [#allocation2], 4
      %s19 = int_to_ptr.vmem [resolvable:$true] %s18
      %21 = dma.hbm_to_vmem [thread:$0]  %s17, 128, %s19, [#allocation3]
    $region5: #{tpu_custom_call.1} parent=1 // pred_fallthru
      _
    // Predicated region
    $region6: #{tpu_custom_call.1} parent=1 // pred_check
      _
    $region7: #{tpu_custom_call.1} parent=1 // pred_check_branch
      %23 = sbr.rel (0) target = $region9
    $region8: #{tpu_custom_call.1} parent=1 // pred_region
      %25 = vsyncadd [#allocation6], 0
      %s26 = sshll.u32 %s1, 4
      %s27 = int_to_ptr.hbm [resolvable:$true] %s26
      %s28 = sshll.u32 [#allocation5], 4
      %s29 = int_to_ptr.vmem [resolvable:$true] %s28
      %34 = dma.hbm_to_vmem [thread:$0]  %s27, 2048, %s29, [#allocation6], 128, 128, 8
    $region9: #{tpu_custom_call.1} parent=1 // pred_fallthru
      _
    // Predicated region
    $region10: #{tpu_custom_call.1} parent=1 // pred_check
      _
    $region11: #{tpu_custom_call.1} parent=1 // pred_check_branch
      %36 = sbr.rel (0) target = $region13
    $region12: #{tpu_custom_call.1} parent=1 // pred_region
      _
    $region13: #{tpu_custom_call.1} parent=1 // pred_fallthru
      _
    // Predicated region
    $region14: #{tpu_custom_call.1} parent=1 // pred_check
      _
    $region15: #{tpu_custom_call.1} parent=1 // pred_check_branch
      %38 = sbr.rel (0) target = $region17
    $region16: #{tpu_custom_call.1} parent=1 // pred_region
      %40 = dma.done [#allocation3], 128
    $region17: #{tpu_custom_call.1} parent=1 // pred_fallthru
      _
    // Predicated region
    $region18: #{tpu_custom_call.1} parent=1 // pred_check
      _
    $region19: #{tpu_custom_call.1} parent=1 // pred_check_branch
      %42 = sbr.rel (0) target = $region21
    $region20: #{tpu_custom_call.1} parent=1 // pred_region
      %44 = dma.done [#allocation6], 2048
    $region21: #{tpu_custom_call.1} parent=1 // pred_fallthru
      _
    %v45 = vld [vmem:[#allocation2] sm:$0xff]
    %v46 = vld [vmem:[#allocation5] sm:$0xff]
    %v47 = vld [vmem:[#allocation5 + $0x8] sm:$0xff]
    %v48 = vld [vmem:[#allocation5 + $0x10] sm:$0xff]
    %v49 = vld [vmem:[#allocation5 + $0x18] sm:$0xff]
    %v50 = vld [vmem:[#allocation5 + $0x20] sm:$0xff]
    %v51 = vld [vmem:[#allocation5 + $0x28] sm:$0xff]
    %v52 = vld [vmem:[#allocation5 + $0x30] sm:$0xff]
    %v53 = vld [vmem:[#allocation5 + $0x38] sm:$0xff]
    %v54 = vld [vmem:[#allocation5 + $0x40] sm:$0xff]
    %v55 = vld [vmem:[#allocation5 + $0x48] sm:$0xff]
    %v56 = vld [vmem:[#allocation5 + $0x50] sm:$0xff]
    %v57 = vld [vmem:[#allocation5 + $0x58] sm:$0xff]
    %v58 = vld [vmem:[#allocation5 + $0x60] sm:$0xff]
    %v59 = vld [vmem:[#allocation5 + $0x68] sm:$0xff]
    %v60 = vld [vmem:[#allocation5 + $0x70] sm:$0xff]
    %v61 = vld [vmem:[#allocation5 + $0x78] sm:$0xff]
    %v62 = vld [vmem:[%s2] sm:$0x1]
    %v64 = vperm.slane %v62, 0
    %66 = vmatpush.msra.mxu0 %v61
    %67 = vmatpush.msra.mxu0 %v60
    %68 = vmatpush.msra.mxu0 %v59
    %69 = vmatpush.msra.mxu0 %v58
    %70 = vmatpush.msra.mxu0 %v57
    %71 = vmatpush.msra.mxu0 %v56
    %72 = vmatpush.msra.mxu0 %v55
    %73 = vmatpush.msra.mxu0 %v54
    %74 = vmatpush.msra.mxu0 %v53
    %75 = vmatpush.msra.mxu0 %v52
    %76 = vmatpush.msra.mxu0 %v51
    %77 = vmatpush.msra.mxu0 %v50
    %78 = vmatpush.msra.mxu0 %v49
    %79 = vmatpush.msra.mxu0 %v48
    %80 = vmatpush.msra.mxu0 %v47
    %81 = vmatpush.msra.mxu0 %v46
    %82 = vmatmul.f32.gmra.mxu0 %v45
    %v83 = vpop.f32.mrf.mxu0
    %v84 = vadd.f32 %v64, %v83
    %85 = vdwg.mxu0
    %86 = vst [vmem:[#allocation7] sm:$0xff] %v84
    // Predicated region
    $region22: #{tpu_custom_call.1} parent=1 // pred_check
      _
    $region23: #{tpu_custom_call.1} parent=1 // pred_check_branch
      %88 = sbr.rel (0) target = $region25
    $region24: #{tpu_custom_call.1} parent=1 // pred_region
      %90 = vsyncadd [#allocation4], 0
      %s92 = sshll.u32 [#allocation7], 4
      %s93 = int_to_ptr.vmem [resolvable:$true] %s92
      %s94 = sshll.u32 %s3, 4
      %s95 = int_to_ptr.hbm [resolvable:$true] %s94
      %97 = dma.vmem_to_hbm [thread:$0]  %s93, 128, %s95, [#allocation4]
    $region25: #{tpu_custom_call.1} parent=1 // pred_fallthru
      _
    // Predicated region
    $region26: #{tpu_custom_call.1} parent=1 // pred_check
      _
    $region27: #{tpu_custom_call.1} parent=1 // pred_check_branch
      %99 = sbr.rel (0) target = $region29
    $region28: #{tpu_custom_call.1} parent=1 // pred_region
      %101 = dma.done [#allocation4], 128
    $region29: #{tpu_custom_call.1} parent=1 // pred_fallthru
      _
    %102 = vsyncpa [#allocation3], 1
    %103 = vsyncpa [#allocation6], 1
    %104 = vsyncpa [#allocation4], 1

</llo_original>
